<compile_context>
chip_gen: v6e
topology: v6e:2x2x1
jax: 0.10.0
libtpu: 0.0.40
codegen_flags: <defaults>
</compile_context>

<pallas_src>
import functools

import jax
import jax.numpy as jnp
from jax.experimental import pallas as pl
from jax.experimental.pallas import tpu as pltpu


def _layernorm_kernel(x_ref, g_ref, b_ref, o_ref, *, eps, inv_m, inv_m1, affine):
    # x_ref block: (1, C, L) -> load the (C, L) sample tile, compute in f32.
    x = x_ref[0].astype(jnp.float32)                       # (C, L)

    mean = jnp.sum(x, keepdims=True) * inv_m               # (1, 1)
    d = x - mean
    var = jnp.sum(d * d, keepdims=True) * inv_m1           # unbiased (N-1), (1, 1)
    rstd = 1.0 / (jnp.sqrt(var) + eps)                     # torch: (x-mean)/(std+eps)

    y = d * rstd
    if affine:
        # per-channel scale/shift: (C, 1) broadcasts along the lane (L) axis.
        y = y * g_ref[...].astype(jnp.float32) + b_ref[...].astype(jnp.float32)

    o_ref[0] = y.astype(o_ref.dtype)


def layer_norm(x, gamma=None, beta=None, *, eps=1e-5, affine=True):
    """Pallas TPU implementation of LayerNorm.forward (per-sample norm + affine)."""
    orig_shape = x.shape
    N = orig_shape[0]
    C = orig_shape[1] if x.ndim > 1 else 1
    M = 1
    for s in orig_shape[1:]:
        M *= int(s)
    M = max(M, 1)
    L = M // C

    x3 = x.reshape(N, C, L)                                # view-level reshape only

    if affine:
        g = gamma.reshape(C, 1).astype(jnp.float32)
        b = beta.reshape(C, 1).astype(jnp.float32)
    else:
        g = jnp.ones((C, 1), jnp.float32)
        b = jnp.zeros((C, 1), jnp.float32)

    kern = functools.partial(
        _layernorm_kernel,
        eps=float(eps),
        inv_m=1.0 / float(M),
        inv_m1=1.0 / float(max(M - 1, 1)),
        affine=affine,
    )

    out = pl.pallas_call(
        kern,
        out_shape=jax.ShapeDtypeStruct((N, C, L), x.dtype),
        grid_spec=pltpu.PrefetchScalarGridSpec(
            num_scalar_prefetch=0,
            grid=(N,),
            in_specs=[
                pl.BlockSpec((1, C, L), lambda n: (n, 0, 0)),   # one full sample / step
                pl.BlockSpec((C, 1), lambda n: (0, 0)),         # gamma (resident)
                pl.BlockSpec((C, 1), lambda n: (0, 0)),         # beta  (resident)
            ],
            out_specs=pl.BlockSpec((1, C, L), lambda n: (n, 0, 0)),
        ),
        compiler_params=pltpu.CompilerParams(
            dimension_semantics=("parallel",),                  # samples independent
        ),
    )(x3, g, b)

    return out.reshape(orig_shape)


def _layernorm_ref(x, gamma, beta, eps=1e-5, affine=True):
    """Pure-JAX reference matching the PyTorch module (unbiased std, std+eps)."""
    N = x.shape[0]
    xf = x.reshape(N, -1).astype(jnp.float32)
    mean = xf.mean(axis=1)
    var = jnp.sum((xf - mean[:, None]) ** 2, axis=1) / (xf.shape[1] - 1)
    std = jnp.sqrt(var)
    bshape = (N,) + (1,) * (x.ndim - 1)
    y = (x.astype(jnp.float32) - mean.reshape(bshape)) / (std.reshape(bshape) + eps)
    if affine:
        gshape = (1, -1) + (1,) * (x.ndim - 2)
        y = y * gamma.reshape(gshape) + beta.reshape(gshape)
    return y.astype(x.dtype)


if __name__ == "__main__":
    key = jax.random.PRNGKey(0)
    k1, k2 = jax.random.split(key)

    # NCHW input consistent with the module: batch=2, channels=4, spatial=16x16.
    N, C, H, W = 2, 4, 16, 16
    x = jax.random.normal(k1, (N, C, H, W), dtype=jnp.float32)
    gamma = jax.random.uniform(k2, (C,), dtype=jnp.float32)   # torch: uniform_()
    beta = jnp.zeros((C,), jnp.float32)                       # torch: zeros

    y = layer_norm(x, gamma, beta, eps=1e-5, affine=True)
    y = jax.block_until_ready(y)

    ref = _layernorm_ref(x, gamma, beta, eps=1e-5, affine=True)
    assert jnp.allclose(y, ref, atol=1e-5, rtol=1e-5), float(jnp.abs(y - ref).max())

    # also exercise the affine=False path once
    y2 = jax.block_until_ready(layer_norm(x, eps=1e-5, affine=False))
    ref2 = _layernorm_ref(x, gamma, beta, eps=1e-5, affine=False)
    assert jnp.allclose(y2, ref2, atol=1e-5, rtol=1e-5), float(jnp.abs(y2 - ref2).max())

    print("KERNEL_OK")
</pallas_src>

<mosaic_0001>
module attributes {stable_mosaic.version = 11 : i64} {
  func.func @_layernorm_kernel(%arg0: i32, %arg1: memref<1x4x256xf32, #tpu.memory_space<vmem>>, %arg2: memref<4x1xf32, #tpu.memory_space<vmem>>, %arg3: memref<4x1xf32, #tpu.memory_space<vmem>>, %arg4: memref<1x4x256xf32, #tpu.memory_space<vmem>>) attributes {dimension_semantics = [#tpu.dimension_semantics<parallel>], iteration_bounds = array<i64: 2>, scalar_prefetch = 0 : i64, scratch_operands = 0 : i64, tpu.core_type = #tpu.core_type<tc>, window_params = [{transform_indices = @transform_0, window_bounds = array<i64: 1, 4, 256>}, {pipeline_mode = #tpu.pipeline_mode<synchronous>, transform_indices = @transform_1, window_bounds = array<i64: 4, 1>}, {pipeline_mode = #tpu.pipeline_mode<synchronous>, transform_indices = @transform_2, window_bounds = array<i64: 4, 1>}, {transform_indices = @transform_3, window_bounds = array<i64: 1, 4, 256>}]} {
    %c0 = arith.constant 0 : index
    %c0_0 = arith.constant 0 : index
    %c0_1 = arith.constant 0 : index
    %0 = vector.load %arg1[%c0, %c0_0, %c0_1] : memref<1x4x256xf32, #tpu.memory_space<vmem>>, vector<1x4x256xf32>
    %1 = vector.shape_cast %0 : vector<1x4x256xf32> to vector<4x256xf32>
    %2 = vector.shape_cast %1 : vector<4x256xf32> to vector<1x4x256xf32>
    %cst = arith.constant dense<0.000000e+00> : vector<1xf32>
    %3 = vector.multi_reduction <add>, %2, %cst [1, 2] : vector<1x4x256xf32> to vector<1xf32>
    %4 = vector.shape_cast %3 : vector<1xf32> to vector<1x1x1xf32>
    %5 = vector.extract %4[0, 0, 0] : f32 from vector<1x1x1xf32>
    %6 = vector.broadcast %5 : f32 to vector<1x1xf32>
    %cst_2 = arith.constant 9.765625E-4 : f32
    %7 = vector.broadcast %cst_2 : f32 to vector<1x1xf32>
    %8 = arith.mulf %6, %7 : vector<1x1xf32>
    %9 = vector.broadcast %8 : vector<1x1xf32> to vector<4x256xf32>
    %10 = arith.subf %1, %9 : vector<4x256xf32>
    %11 = arith.mulf %10, %10 : vector<4x256xf32>
    %12 = vector.shape_cast %11 : vector<4x256xf32> to vector<1x4x256xf32>
    %cst_3 = arith.constant dense<0.000000e+00> : vector<1xf32>
    %13 = vector.multi_reduction <add>, %12, %cst_3 [1, 2] : vector<1x4x256xf32> to vector<1xf32>
    %14 = vector.shape_cast %13 : vector<1xf32> to vector<1x1x1xf32>
    %15 = vector.extract %14[0, 0, 0] : f32 from vector<1x1x1xf32>
    %16 = vector.broadcast %15 : f32 to vector<1x1xf32>
    %cst_4 = arith.constant 9.77517105E-4 : f32
    %17 = vector.broadcast %cst_4 : f32 to vector<1x1xf32>
    %18 = arith.mulf %16, %17 : vector<1x1xf32>
    %19 = math.sqrt %18 : vector<1x1xf32>
    %cst_5 = arith.constant 9.99999974E-6 : f32
    %20 = vector.broadcast %cst_5 : f32 to vector<1x1xf32>
    %21 = arith.addf %19, %20 : vector<1x1xf32>
    %cst_6 = arith.constant 1.000000e+00 : f32
    %22 = vector.broadcast %cst_6 : f32 to vector<1x1xf32>
    %23 = arith.divf %22, %21 : vector<1x1xf32>
    %24 = vector.broadcast %23 : vector<1x1xf32> to vector<4x256xf32>
    %25 = arith.mulf %10, %24 : vector<4x256xf32>
    %c0_7 = arith.constant 0 : index
    %c0_8 = arith.constant 0 : index
    %26 = vector.load %arg2[%c0_7, %c0_8] : memref<4x1xf32, #tpu.memory_space<vmem>>, vector<4x1xf32>
    %27 = vector.broadcast %26 : vector<4x1xf32> to vector<4x256xf32>
    %28 = arith.mulf %25, %27 : vector<4x256xf32>
    %c0_9 = arith.constant 0 : index
    %c0_10 = arith.constant 0 : index
    %29 = vector.load %arg3[%c0_9, %c0_10] : memref<4x1xf32, #tpu.memory_space<vmem>>, vector<4x1xf32>
    %30 = vector.broadcast %29 : vector<4x1xf32> to vector<4x256xf32>
    %31 = arith.addf %28, %30 : vector<4x256xf32>
    %c0_11 = arith.constant 0 : index
    %c0_12 = arith.constant 0 : index
    %c0_13 = arith.constant 0 : index
    %32 = vector.load %arg4[%c0_11, %c0_12, %c0_13] : memref<1x4x256xf32, #tpu.memory_space<vmem>>, vector<1x4x256xf32>
    %33 = vector.shape_cast %32 : vector<1x4x256xf32> to vector<4x256xf32>
    %34 = vector.shape_cast %31 : vector<4x256xf32> to vector<1x4x256xf32>
    tpu.vector_store %arg4[%c0_11, %c0_12, %c0_13], %34 {strides = array<i32>} : memref<1x4x256xf32, #tpu.memory_space<vmem>>, vector<1x4x256xf32>,
    return
  }
  func.func @transform_0(%arg0: i32) -> (i32, i32, i32) {
    %c0_i32 = arith.constant 0 : i32
    %c0_i32_0 = arith.constant 0 : i32
    %c0_i32_1 = arith.constant 0 : i32
    return %arg0, %c0_i32, %c0_i32_0 : i32, i32, i32
  }
  func.func @transform_1(%arg0: i32) -> (i32, i32) {
    %c0_i32 = arith.constant 0 : i32
    %c0_i32_0 = arith.constant 0 : i32
    %c0_i32_1 = arith.constant 0 : i32
    return %c0_i32, %c0_i32_0 : i32, i32
  }
  func.func @transform_2(%arg0: i32) -> (i32, i32) {
    %c0_i32 = arith.constant 0 : i32
    %c0_i32_0 = arith.constant 0 : i32
    %c0_i32_1 = arith.constant 0 : i32
    return %c0_i32, %c0_i32_0 : i32, i32
  }
  func.func @transform_3(%arg0: i32) -> (i32, i32, i32) {
    %c0_i32 = arith.constant 0 : i32
    %c0_i32_0 = arith.constant 0 : i32
    %c0_i32_1 = arith.constant 0 : i32
    return %arg0, %c0_i32, %c0_i32_0 : i32, i32, i32
  }
}

</mosaic_0001>

<llo_original>
// kernel: tpu_custom_call.1
$region0: #{tpu_custom_call.1}
  #allocation0 [shape = 'u32[]', space=smem, size = 0x4, offset = 0x4, fixed_abs, tag = 'smem constant byte address 0x4 - core index']
  #allocation1 [shape = 'u32[144,128]{1,0:T(1,128)}', space=vmem, size = 0x12000, scoped, tag = 'internal scratch']
  %s0 = inlined_call_operand.hbm [shape: f32[2,4,256], index: 0, kind: input, shape index: {}]
  %s1 = inlined_call_operand.vmem [shape: f32[4,1], index: 1, kind: input, shape index: {}]
  %s2 = inlined_call_operand.vmem [shape: f32[4,1], index: 2, kind: input, shape index: {}]
  %s3 = inlined_call_operand.hbm [shape: f32[2,4,256], index: 3, kind: output, shape index: {}]
  %s4 = sld [smem:[#allocation0]]
  $region49: #{tpu_custom_call.1} parent=0
    _
  %s6 = ssub.s32 1, %s4
  %s7 = scalar_select 0, %s6, %s4
  $region1: #{tpu_custom_call.1} parent=0
    #allocation2 [shape = 'u8[8192]{0}', space=vmem, size = 0x2000, scoped, tag = 'input window, operand 0']
    #allocation3 [shape = 's32[2]{0}', space=sflag, size = 0x8, scoped, tag = 'scoped memory for tpu_custom_call.1']
    #allocation4 [shape = 's32[2]{0}', space=sflag, size = 0x8, scoped, tag = 'scoped memory for tpu_custom_call.1']
    #allocation5 [shape = 'u8[8192]{0}', space=vmem, size = 0x2000, scoped, tag = 'output window, operand 0']
    %8 = vsyncpa [#allocation3], 0
    %s9 = scalar_lea.sflag [#allocation3], 1
    %10 = vsyncpa %s9, 0
    %11 = vsyncpa [#allocation4], 0
    %s12 = scalar_lea.sflag [#allocation4], 1
    %13 = vsyncpa %s12, 0
    loop: start=0, step=1, limit=4
    $region2: #{tpu_custom_call.1} parent=1 // loop_pre_header
      _
    $region3: #{tpu_custom_call.1} parent=1 // loop_header
      %s15 = sphi 0, %s19
      %p16 = scmp.ge.s32.totalorder %s15, 4
      %s25 = sphi 0, %s27
      %s28 = sphi 0, %s25
      %s29 = sphi 0, %s28
      %s45 = sphi 0, %s29
      %s49 = sphi 0, %s49
      %s51 = sphi 0, %s49
      %s52 = sphi 0, %s51
      %s66 = sphi 0, %s52
      %s70 = sphi 0, %s70
      %s72 = sphi 0, %s70
      %s73 = sphi 0, %s72
      %s87 = sphi 0, %s73
      %s93 = sphi 0, %s95
      %s96 = sphi 0, %s93
      %s97 = sphi 0, %s96
      %s113 = sphi 0, %s97
    $region4: #{tpu_custom_call.1} parent=1 // loop_header_branch
      %18 = sbr.rel (%p16) target = $region8
    $region5: #{tpu_custom_call.1} parent=1 // loop_body
      %s20 = ssub.s32 %s15, 1
      %s21 = ssub.s32 %s15, 2
      %s22 = sadd.s32 %s15, 1
      %s23 = ssub.s32 %s15, %s22
      %p24 = scmp.eq.s32.totalorder %s23, 0
      %s26 = sadd.s32 %s25, 1
      %s27 = scalar_select %p24, %s25, %s26
      %p30 = pneg %p24
      %p31 = scmp.eq.s32.totalorder %s15, 1
      %p32 = por %p30, %p31
      %p33 = scmp.ne.s32.totalorder %s25, %s28
      %p34 = scmp.eq.s32.totalorder %s15, 0
      %p35 = por %p33, %p34
      %p36 = scmp.ne.s32.totalorder %s25, %s28
      %p37 = scmp.eq.s32.totalorder %s20, 1
      %p38 = por %p36, %p37
      %p39 = scmp.ne.s32.totalorder %s28, %s29
      %p40 = scmp.eq.s32.totalorder %s20, 0
      %p41 = por %p39, %p40
      %p42 = scmp.ne.s32.totalorder %s28, %s29
      %p43 = scmp.eq.s32.totalorder %s21, 1
      %p44 = por %p42, %p43
      %p46 = scmp.ne.s32.totalorder %s29, %s45
      %p47 = scmp.eq.s32.totalorder %s21, 0
      %p48 = por %p46, %p47
      %s50 = sadd.s32 %s49, 1
      %p53 = scmp.eq.s32.totalorder %s15, 1
      %p54 = scmp.ne.s32.totalorder %s49, %s51
      %p55 = scmp.eq.s32.totalorder %s15, 0
      %p56 = por %p54, %p55
      %p57 = scmp.ne.s32.totalorder %s49, %s51
      %p58 = scmp.eq.s32.totalorder %s20, 1
      %p59 = por %p57, %p58
      %p60 = scmp.ne.s32.totalorder %s51, %s52
      %p61 = scmp.eq.s32.totalorder %s20, 0
      %p62 = por %p60, %p61
      %p63 = scmp.ne.s32.totalorder %s51, %s52
      %p64 = scmp.eq.s32.totalorder %s21, 1
      %p65 = por %p63, %p64
      %p67 = scmp.ne.s32.totalorder %s52, %s66
      %p68 = scmp.eq.s32.totalorder %s21, 0
      %p69 = por %p67, %p68
      %s71 = sadd.s32 %s70, 1
      %p74 = scmp.eq.s32.totalorder %s15, 1
      %p75 = scmp.ne.s32.totalorder %s70, %s72
      %p76 = scmp.eq.s32.totalorder %s15, 0
      %p77 = por %p75, %p76
      %p78 = scmp.ne.s32.totalorder %s70, %s72
      %p79 = scmp.eq.s32.totalorder %s20, 1
      %p80 = por %p78, %p79
      %p81 = scmp.ne.s32.totalorder %s72, %s73
      %p82 = scmp.eq.s32.totalorder %s20, 0
      %p83 = por %p81, %p82
      %p84 = scmp.ne.s32.totalorder %s72, %s73
      %p85 = scmp.eq.s32.totalorder %s21, 1
      %p86 = por %p84, %p85
      %p88 = scmp.ne.s32.totalorder %s73, %s87
      %p89 = scmp.eq.s32.totalorder %s21, 0
      %p90 = por %p88, %p89
      %s91 = ssub.s32 %s15, %s22
      %p92 = scmp.eq.s32.totalorder %s91, 0
      %s94 = sadd.s32 %s93, 1
      %s95 = scalar_select %p92, %s93, %s94
      %p98 = pneg %p92
      %p99 = scmp.eq.s32.totalorder %s15, 1
      %p100 = por %p98, %p99
      %p101 = scmp.ne.s32.totalorder %s93, %s96
      %p102 = scmp.eq.s32.totalorder %s15, 0
      %p103 = por %p101, %p102
      %p104 = scmp.ne.s32.totalorder %s93, %s96
      %p105 = scmp.eq.s32.totalorder %s20, 1
      %p106 = por %p104, %p105
      %p107 = scmp.ne.s32.totalorder %s96, %s97
      %p108 = scmp.eq.s32.totalorder %s20, 0
      %p109 = por %p107, %p108
      %p110 = scmp.ne.s32.totalorder %s96, %s97
      %p111 = scmp.eq.s32.totalorder %s21, 1
      %p112 = por %p110, %p111
      %p114 = scmp.ne.s32.totalorder %s97, %s113
      %p115 = scmp.eq.s32.totalorder %s21, 0
      %p116 = por %p114, %p115
      %p117 = scmp.le.s32.totalorder 1, %s15
      %p118 = scmp.lt.s32.totalorder %s15, 3
      %p119 = pnand %p117, %p118
      %p120 = pneg %p119
      // Predicated region
      $region9: #{tpu_custom_call.1} parent=5 // pred_check
        _
      $region10: #{tpu_custom_call.1} parent=5 // pred_check_branch
        %122 = sbr.rel (%p119) target = $region12
      $region11: #{tpu_custom_call.1} parent=5 // pred_region
        %s123 = ssub.s32 %s15, 1
        // Predicated region
        $region13: #{tpu_custom_call.1} parent=11 // pred_check
          %p124 = pneg %p62
        $region14: #{tpu_custom_call.1} parent=11 // pred_check_branch
          %126 = sbr.rel (%p124) target = $region16
        $region15: #{tpu_custom_call.1} parent=11 // pred_region
          _
        $region16: #{tpu_custom_call.1} parent=11 // pred_fallthru
          _
        // Predicated region
        $region17: #{tpu_custom_call.1} parent=11 // pred_check
          %p127 = pneg %p83
        $region18: #{tpu_custom_call.1} parent=11 // pred_check_branch
          %129 = sbr.rel (%p127) target = $region20
        $region19: #{tpu_custom_call.1} parent=11 // pred_region
          _
        $region20: #{tpu_custom_call.1} parent=11 // pred_fallthru
          _
      $region12: #{tpu_custom_call.1} parent=5 // pred_fallthru
        _
      %p130 = scmp.lt.s32.totalorder %s15, 2
      // Predicated region
      $region21: #{tpu_custom_call.1} parent=5 // pred_check
        %p131 = pneg %p130
      $region22: #{tpu_custom_call.1} parent=5 // pred_check_branch
        %133 = sbr.rel (%p131) target = $region24
      $region23: #{tpu_custom_call.1} parent=5 // pred_region
        // Predicated region
        $region25: #{tpu_custom_call.1} parent=23 // pred_check
          %p134 = pneg %p35
        $region26: #{tpu_custom_call.1} parent=23 // pred_check_branch
          %136 = sbr.rel (%p134) target = $region28
        $region27: #{tpu_custom_call.1} parent=23 // pred_region
          %s137 = sand.u32 %s25, 1
          %s138 = scalar_lea.sflag [#allocation3], %s137
          %s139 = sand.u32 %s25, 1
          %s140 = smul.addr %s139, 8
          %s141 = scalar_lea.vmem [#allocation2], %s140
          %s143 = ssub.s32 128, 128
          %144 = vsyncadd %s138, %s143
          %s145 = smul.addr %s15, 2
          %s146 = smul.addr %s145, 64
          %s147 = scalar_lea.hbm %s0, %s146
          %s149 = sshll.u32 %s141, 4
          %s150 = int_to_ptr.vmem [resolvable:$true] %s149
          %152 = dma.hbm_to_vmem [thread:$0]  %s147, 128, %s150, %s138
        $region28: #{tpu_custom_call.1} parent=23 // pred_fallthru
          _
      $region24: #{tpu_custom_call.1} parent=5 // pred_fallthru
        _
      %p153 = scmp.le.s32.totalorder 1, %s15
      %p154 = scmp.lt.s32.totalorder %s15, 3
      %p155 = pnand %p153, %p154
      %p156 = pneg %p155
      // Predicated region
      $region29: #{tpu_custom_call.1} parent=5 // pred_check
        _
      $region30: #{tpu_custom_call.1} parent=5 // pred_check_branch
        %158 = sbr.rel (%p155) target = $region32
      $region31: #{tpu_custom_call.1} parent=5 // pred_region
        %s159 = ssub.s32 %s15, 1
        %s160 = sand.u32 %s28, 1
        %s161 = scalar_lea.sflag [#allocation3], %s160
        %s162 = sand.u32 %s28, 1
        %s163 = smul.addr %s162, 8
        %s164 = scalar_lea.vmem [#allocation2], %s163
        // Predicated region
        $region33: #{tpu_custom_call.1} parent=31 // pred_check
          %p165 = pneg %p41
        $region34: #{tpu_custom_call.1} parent=31 // pred_check_branch
          %167 = sbr.rel (%p165) target = $region36
        $region35: #{tpu_custom_call.1} parent=31 // pred_region
          %168 = dma.done %s161, 128
        $region36: #{tpu_custom_call.1} parent=31 // pred_fallthru
          _
        %s169 = sand.u32 %s28, 1
        %s170 = scalar_lea.sflag [#allocation3], %s169
        %s171 = sand.u32 %s28, 1
        %s172 = smul.addr %s171, 8
        %s173 = scalar_lea.vmem [#allocation2], %s172
        %p174 = pneg %p41
        %p175 = pneg %p38
        %p176 = pneg %p62
        %p177 = pneg %p59
        %p178 = pneg %p83
        %p179 = pneg %p80
        %p180 = pneg %p109
        %p181 = pneg %p106
        %s182 = sand.u32 %s96, 1
        %s183 = scalar_lea.sflag [#allocation4], %s182
        %s184 = sand.u32 %s96, 1
        %s185 = smul.addr %s184, 8
        %s186 = scalar_lea.vmem [#allocation5], %s185
        %v187 = vld [vmem:[%s164] sm:$0xff]
        %v189 = vcombine.high %v187, %v187
        %vm191 = vcmask 1043456
        %v192 = vsel %vm191, %v187, 0.0
        %v193 = vsel %vm191, %v189, 0.0
        %v194 = vadd.f32 %v192, %v193
        %195 = vadd.xlane.f32.xlu0 %v194
        %v196 = vpop.xlane.xlu0 %195
        %v197 = vrot.slane %v196, 4
        %v198 = vadd.f32 %v196, %v197
        %v199 = vrot.slane %v198, 2
        %v200 = vadd.f32 %v198, %v199
        %v201 = vrot.slane %v200, 1
        %v202 = vadd.f32 %v200, %v201
        %s203 = vtos %v202
        %v204 = vstv %s203
        %v205 = vmul.f32 %v204, 0.0009765625
        %v206 = vsub.f32 %v187, %v205
        %v207 = vmul.f32 %v206, %v206
        %v209 = vcombine.high %v207, %v207
        %v211 = vsel %vm191, %v207, 0.0
        %v212 = vsel %vm191, %v209, 0.0
        %v213 = vadd.f32 %v211, %v212
        %214 = vadd.xlane.f32.xlu0 %v213
        %v215 = vpop.xlane.xlu0 %214
        %v216 = vrot.slane %v215, 4
        %v217 = vadd.f32 %v215, %v216
        %v218 = vrot.slane %v217, 2
        %v219 = vadd.f32 %v217, %v218
        %v220 = vrot.slane %v219, 1
        %v221 = vadd.f32 %v219, %v220
        %s222 = vtos %v221
        %v223 = vstv %s222
        %v224 = vmul.f32 %v223, 0.0009775171
        %v225 = vrsqrt.pop %v224
        %v226 = vmul.f32 %v224, %v225
        %vm227 = vcmp.eq.f32.partialorder %v224, inf
        %v228 = vsel %vm227, %v224, %v226
        %vm229 = vcmp.eq.f32.partialorder %v224, 0.0
        %v230 = vand.u32 %v224, 2147483648
        %v231 = vsel %vm229, %v230, %v228
        %v232 = vadd.f32 %v231, 1e-05
        %v233 = vrcp.pop %v232
        %v234 = vmul.f32 1.0, %v233
        %v235 = vmul.f32 %v206, %v234
        %v236 = vld [vmem:[%s1] sm:$0xf]
        %238 = vset.pattern.permute.xlu0 0
        %239 = vperm.xlu0 %238, %v236
        %v240 = vpop.permute.xlu0 %239
        %v242 = vunpack.c.l.s4 839922192
        %v243 = vunpack.c.0.s8 %v242
        %v244 = vlaneseq
        %v245 = vshrl.u32 %v244, 7
        %v246 = vsub.s32 %v243, %v245
        %v247 = vrot.slane %v240, %v246
        %v249 = vmul.f32 %v235, %v247
        %v250 = vld [vmem:[%s2] sm:$0xf]
        %252 = vset.pattern.permute.xlu0 0
        %253 = vperm.xlu0 %252, %v250
        %v254 = vpop.permute.xlu0 %253
        %v256 = vunpack.c.l.s4 839922192
        %v257 = vunpack.c.0.s8 %v256
        %v258 = vlaneseq
        %v259 = vshrl.u32 %v258, 7
        %v260 = vsub.s32 %v257, %v259
        %v261 = vrot.slane %v254, %v260
        %v263 = vadd.f32 %v249, %v261
        %264 = vst [vmem:[%s186] sm:$0xff] %v263
        %s265 = sand.u32 %s96, 1
        %s266 = scalar_lea.sflag [#allocation4], %s265
        %s267 = sand.u32 %s96, 1
        %s268 = smul.addr %s267, 8
        %s269 = scalar_lea.vmem [#allocation5], %s268
        // Predicated region
        $region37: #{tpu_custom_call.1} parent=31 // pred_check
          %p270 = pneg %p106
        $region38: #{tpu_custom_call.1} parent=31 // pred_check_branch
          %272 = sbr.rel (%p270) target = $region40
        $region39: #{tpu_custom_call.1} parent=31 // pred_region
          %s274 = ssub.s32 128, 128
          %275 = vsyncadd %s266, %s274
          %s276 = smul.addr %s20, 2
          %s277 = smul.addr %s276, 64
          %s278 = scalar_lea.hbm %s3, %s277
          %s280 = sshll.u32 %s269, 4
          %s281 = int_to_ptr.vmem [resolvable:$true] %s280
          %283 = dma.vmem_to_hbm [thread:$0]  %s281, 128, %s278, %s266
        $region40: #{tpu_custom_call.1} parent=31 // pred_fallthru
          _
      $region32: #{tpu_custom_call.1} parent=5 // pred_fallthru
        _
      %p284 = scmp.le.s32.totalorder 2, %s15
      // Predicated region
      $region41: #{tpu_custom_call.1} parent=5 // pred_check
        %p285 = pneg %p284
      $region42: #{tpu_custom_call.1} parent=5 // pred_check_branch
        %287 = sbr.rel (%p285) target = $region44
      $region43: #{tpu_custom_call.1} parent=5 // pred_region
        %s288 = ssub.s32 %s15, 2
        // Predicated region
        $region45: #{tpu_custom_call.1} parent=43 // pred_check
          %p289 = pneg %p112
        $region46: #{tpu_custom_call.1} parent=43 // pred_check_branch
          %291 = sbr.rel (%p289) target = $region48
        $region47: #{tpu_custom_call.1} parent=43 // pred_region
          %s292 = sand.u32 %s97, 1
          %s293 = scalar_lea.sflag [#allocation4], %s292
          %s294 = sand.u32 %s97, 1
          %s295 = smul.addr %s294, 8
          %s296 = scalar_lea.vmem [#allocation5], %s295
          %297 = dma.done %s293, 128
        $region48: #{tpu_custom_call.1} parent=43 // pred_fallthru
          _
      $region44: #{tpu_custom_call.1} parent=5 // pred_fallthru
        _
    $region6: #{tpu_custom_call.1} parent=1 // loop_footer
      %s19 = sadd.s32 1, %s15
    $region7: #{tpu_custom_call.1} parent=1 // loop_footer_branch
      %14 = sbr.rel target = $region3
    $region8: #{tpu_custom_call.1} parent=1 // loop_exit
      _
    %298 = vsyncpa [#allocation3], 1
    %s299 = scalar_lea.sflag [#allocation3], 1
    %300 = vsyncpa %s299, 1
    %301 = vsyncpa [#allocation4], 1
    %s302 = scalar_lea.sflag [#allocation4], 1
    %303 = vsyncpa %s302, 1

</llo_original>
